<compile_context>
chip_gen: v5e
topology: v5e:2x2
jax: 0.10.0
libtpu: 0.0.40
codegen_flags: <defaults>
</compile_context>

<pallas_src>
import functools

import jax
import jax.numpy as jnp
import numpy as np
from jax.experimental import pallas as pl
from jax.experimental.pallas import tpu as pltpu


def make_positional_encoding(embedding_dim: int, max_length: int = 512) -> jnp.ndarray:
    """Deterministic sinusoidal table, shape (max_length, 1, embedding_dim), float32."""
    assert embedding_dim % 2 == 0, (
        "embedding_dim must be even (same limitation as the PyTorch module)")
    position = jnp.arange(0, max_length, dtype=jnp.float32)[:, None]            # (L, 1)
    div_term = jnp.exp(
        jnp.arange(0, embedding_dim, 2, dtype=jnp.float32)
        * (-jnp.log(jnp.float32(10000.0)) / embedding_dim)
    )                                                                            # (D/2,)
    angles = position * div_term                                                 # (L, D/2)
    pe = jnp.zeros((max_length, embedding_dim), dtype=jnp.float32)
    pe = pe.at[:, 0::2].set(jnp.sin(angles))
    pe = pe.at[:, 1::2].set(jnp.cos(angles))
    return pe[:, None, :]                                                        # (L, 1, D)


# ----------------------------- kernels ---------------------------------------


def _pe_add_flat_kernel(x_ref, pe_ref, o_ref, *, batch: int, dim: int):
    """Lane-dense path.  x_ref/o_ref: (ts, batch*dim); pe_ref: (ts, dim) float32.

    dim % 128 == 0, so every slice starts on a lane-tile boundary -> unmasked stores.
    pe_ref is re-read from VMEM each iteration (3 vld slots/cycle make this free)
    instead of hoisting a multi-MiB value that could spill the vreg file.
    """
    for b in range(batch):                     # small static unroll (batch <= 16 here)
        sl = slice(b * dim, (b + 1) * dim)     # static, 128-aligned lane slice
        o_ref[:, sl] = (x_ref[:, sl].astype(jnp.float32)
                        + pe_ref[...].astype(jnp.float32)).astype(o_ref.dtype)


def _pe_add_bcast_kernel(x_ref, pe_ref, o_ref):
    """General path.  x_ref/o_ref: (ts, B, D); pe_ref: (ts, 1, D) float32.

    One broadcast add, one full-block store; no per-batch unroll, works for any D.
    """
    o_ref[...] = (x_ref[...].astype(jnp.float32)
                  + pe_ref[...].astype(jnp.float32)).astype(o_ref.dtype)


# ----------------------------- tiling helpers --------------------------------


def _sublane_multiple(dtype) -> int:
    """Packed-sublane multiple: 8 for 32-bit, 16 for bf16/f16, 32 for int8/fp8."""
    bits = jnp.dtype(dtype).itemsize * 8
    return max(8, 256 // bits)


def _default_target_block_bytes() -> int:
    """~2 MiB blocks by default (v5e 16 MiB scoped-VMEM safe); ~4 MiB on v6e/v7x."""
    try:
        kind = jax.devices()[0].device_kind.lower()
    except Exception:
        kind = ""
    if "v6" in kind or "v7" in kind:
        return 4 * 1024 * 1024     # double-buffered in+out (~17 MiB) < 32 MiB scoped default
    return 2 * 1024 * 1024


def _choose_block_rows(seq: int, row_bytes: int, sublane: int,
                       target_block_bytes: int) -> int:
    """Balanced seq tile: multiple of `sublane`, block <= target, no tiny tail block."""
    ts_max = (target_block_bytes // max(row_bytes, 1)) // sublane * sublane
    ts_max = max(ts_max, sublane)
    if ts_max >= seq:
        if seq < 2 * sublane:
            return seq                       # single small block
        n_blocks = 2                         # keep >=2 grid steps so both v7x TCs get work
    else:
        n_blocks = pl.cdiv(seq, ts_max)      # balance instead of capping at ts_max
    ts = pl.cdiv(seq, n_blocks)
    ts = ((ts + sublane - 1) // sublane) * sublane
    return min(ts, seq)


# ----------------------------- wrapper ----------------------------------------

_MAX_FLAT_UNROLL_BATCH = 16


def fixed_positional_encoding(x: jnp.ndarray, pe: jnp.ndarray, *,
                              donate_x: bool = False,
                              target_block_bytes: int | None = None,
                              min_pallas_bytes: int = 256 * 1024) -> jnp.ndarray:
    """x: (S, B, D); pe: (max_length, 1, D) or (max_length, D). Returns x + pe[:S].

    Set donate_x=True only if the caller donates x (e.g. jit donate_argnums);
    otherwise the alias would make XLA insert a defensive full copy of x.
    """
    S, B, D = x.shape
    L = pe.shape[0]
    if S > L:
        raise ValueError(f"sequence length {S} exceeds pe table length {L}")

    pe_f32 = pe.reshape(L, D)
    if pe_f32.dtype != jnp.float32:
        pe_f32 = pe_f32.astype(jnp.float32)   # table is normally built in f32 -> no-op

    itemsize = jnp.dtype(x.dtype).itemsize
    total_bytes = S * B * D * itemsize

    def _fallback():
        # add in f32, cast back to x.dtype (same numerics as the kernel paths)
        return (x.astype(jnp.float32) + pe_f32[:S][:, None, :]).astype(x.dtype)

    # Tiny problems: launch/DMA setup dwarfs the work -- let XLA fuse the add.
    if total_bytes < min_pallas_bytes:
        return _fallback()

    if target_block_bytes is None:
        target_block_bytes = _default_target_block_bytes()

    sublane = _sublane_multiple(x.dtype)
    row_bytes = B * D * itemsize
    if sublane * row_bytes > target_block_bytes:
        # Even a minimal sequence tile blows the per-block VMEM budget.
        # TODO(synk): also tile the (batch*dim) lane axis for extremely wide rows.
        return _fallback()

    ts = _choose_block_rows(S, row_bytes, sublane, target_block_bytes)
    grid = (pl.cdiv(S, ts),)
    alias = {0: 0} if donate_x else {}
    cost = pl.CostEstimate(flops=S * B * D, transcendentals=0,
                           bytes_accessed=2 * S * B * D * itemsize + S * D * 4)
    cparams = pltpu.CompilerParams(dimension_semantics=("parallel",))

    if D % 128 == 0 and B <= _MAX_FLAT_UNROLL_BATCH:
        # Lane-dense flattened path: (S, B*D), full-width unmasked stores.
        x_flat = x.reshape(S, B * D)
        out_flat = pl.pallas_call(
            functools.partial(_pe_add_flat_kernel, batch=B, dim=D),
            out_shape=jax.ShapeDtypeStruct((S, B * D), x.dtype),
            grid=grid,
            in_specs=[
                pl.BlockSpec((ts, B * D), lambda i: (i, 0)),   # x tile
                pl.BlockSpec((ts, D), lambda i: (i, 0)),       # pe tile (windowed table)
            ],
            out_specs=pl.BlockSpec((ts, B * D), lambda i: (i, 0)),
            input_output_aliases=alias,
            cost_estimate=cost,
            compiler_params=cparams,
        )(x_flat, pe_f32)
        return out_flat.reshape(S, B, D)

    # General 3-D broadcast path (any D, any B): one add, one full-block store.
    pe3d = pe_f32[:, None, :]                                   # (L, 1, D)
    return pl.pallas_call(
        _pe_add_bcast_kernel,
        out_shape=jax.ShapeDtypeStruct((S, B, D), x.dtype),
        grid=grid,
        in_specs=[
            pl.BlockSpec((ts, B, D), lambda i: (i, 0, 0)),      # x tile
            pl.BlockSpec((ts, 1, D), lambda i: (i, 0, 0)),      # pe tile
        ],
        out_specs=pl.BlockSpec((ts, B, D), lambda i: (i, 0, 0)),
        input_output_aliases=alias,
        cost_estimate=cost,
        compiler_params=cparams,
    )(x, pe3d)


if __name__ == "__main__":
    max_length = 512
    key = jax.random.PRNGKey(0)
    k0, k1, k2, k3 = jax.random.split(key, 4)

    # 1) Module-minimal shape (8, 2, 32) -> plain-JAX fallback path.
    S0, B0, D0 = 8, 2, 32
    x0 = jax.random.normal(k0, (S0, B0, D0), dtype=jnp.float32)
    pe0 = make_positional_encoding(D0, max_length)
    ref0 = x0 + pe0[:S0]
    out0 = jax.block_until_ready(fixed_positional_encoding(x0, pe0))
    np.testing.assert_allclose(np.asarray(out0), np.asarray(ref0), rtol=1e-6, atol=1e-6)

    # 2) Lane-dense flattened Pallas path (D % 128 == 0), divisible S.
    S1, B1, D1 = 256, 4, 128
    x1 = jax.random.normal(k1, (S1, B1, D1), dtype=jnp.float32)
    pe1 = make_positional_encoding(D1, max_length)
    ref1 = x1 + pe1[:S1]
    out1 = jax.block_until_ready(fixed_positional_encoding(x1, pe1))
    np.testing.assert_allclose(np.asarray(out1), np.asarray(ref1), rtol=1e-6, atol=1e-6)

    # 3) Non-divisible S -> balanced blocks with a partial last block (masked writeback).
    S2, B2, D2 = 300, 4, 128
    x2 = jax.random.normal(k2, (S2, B2, D2), dtype=jnp.float32)
    ref2 = x2 + pe1[:S2]
    out2 = jax.block_until_ready(fixed_positional_encoding(x2, pe1))
    np.testing.assert_allclose(np.asarray(out2), np.asarray(ref2), rtol=1e-6, atol=1e-6)

    # 4) D not a multiple of 128 -> general 3-D broadcast path.
    S3, B3, D3 = 256, 8, 96
    x3 = jax.random.normal(k3, (S3, B3, D3), dtype=jnp.float32)
    pe3 = make_positional_encoding(D3, max_length)
    ref3 = x3 + pe3[:S3]
    out3 = jax.block_until_ready(fixed_positional_encoding(x3, pe3))
    np.testing.assert_allclose(np.asarray(out3), np.asarray(ref3), rtol=1e-6, atol=1e-6)

    # 5) bf16 activations: packed sublane multiple (16), add done in f32 in-kernel.
    x4 = x1.astype(jnp.bfloat16)
    ref4 = (x4.astype(jnp.float32) + pe1[:S1]).astype(jnp.bfloat16)
    out4 = jax.block_until_ready(fixed_positional_encoding(x4, pe1))
    np.testing.assert_allclose(np.asarray(out4.astype(jnp.float32)),
                               np.asarray(ref4.astype(jnp.float32)),
                               rtol=1e-2, atol=1e-2)

    print("KERNEL_OK")
</pallas_src>

<mosaic_0001>
module attributes {stable_mosaic.version = 11 : i64} {
  func.func @_pe_add_flat_kernel(%arg0: i32, %arg1: memref<128x512xf32, #tpu.memory_space<vmem>>, %arg2: memref<128x128xf32, #tpu.memory_space<vmem>>, %arg3: memref<128x512xf32, #tpu.memory_space<vmem>>) attributes {dimension_semantics = [#tpu.dimension_semantics<parallel>], iteration_bounds = array<i64: 2>, scalar_prefetch = 0 : i64, scratch_operands = 0 : i64, tpu.core_type = #tpu.core_type<tc>, window_params = [{transform_indices = @transform_0, window_bounds = array<i64: 128, 512>}, {transform_indices = @transform_1, window_bounds = array<i64: 128, 128>}, {transform_indices = @transform_2, window_bounds = array<i64: 128, 512>}]} {
    %c0 = arith.constant 0 : index
    %c0_0 = arith.constant 0 : index
    %0 = vector.load %arg1[%c0, %c0_0] : memref<128x512xf32, #tpu.memory_space<vmem>>, vector<128x128xf32>
    %c0_1 = arith.constant 0 : index
    %c0_2 = arith.constant 0 : index
    %1 = vector.load %arg2[%c0_1, %c0_2] : memref<128x128xf32, #tpu.memory_space<vmem>>, vector<128x128xf32>
    %2 = arith.addf %0, %1 : vector<128x128xf32>
    %c0_3 = arith.constant 0 : index
    %c0_4 = arith.constant 0 : index
    %3 = vector.load %arg3[%c0_3, %c0_4] : memref<128x512xf32, #tpu.memory_space<vmem>>, vector<128x128xf32>
    tpu.vector_store %arg3[%c0_3, %c0_4], %2 {strides = array<i32>} : memref<128x512xf32, #tpu.memory_space<vmem>>, vector<128x128xf32>,
    %c0_5 = arith.constant 0 : index
    %c128 = arith.constant 128 : index
    %4 = vector.load %arg1[%c0_5, %c128] : memref<128x512xf32, #tpu.memory_space<vmem>>, vector<128x128xf32>
    %c0_6 = arith.constant 0 : index
    %c0_7 = arith.constant 0 : index
    %5 = vector.load %arg2[%c0_6, %c0_7] : memref<128x128xf32, #tpu.memory_space<vmem>>, vector<128x128xf32>
    %6 = arith.addf %4, %5 : vector<128x128xf32>
    %c0_8 = arith.constant 0 : index
    %c128_9 = arith.constant 128 : index
    %7 = vector.load %arg3[%c0_8, %c128_9] : memref<128x512xf32, #tpu.memory_space<vmem>>, vector<128x128xf32>
    tpu.vector_store %arg3[%c0_8, %c128_9], %6 {strides = array<i32>} : memref<128x512xf32, #tpu.memory_space<vmem>>, vector<128x128xf32>,
    %c0_10 = arith.constant 0 : index
    %c256 = arith.constant 256 : index
    %8 = vector.load %arg1[%c0_10, %c256] : memref<128x512xf32, #tpu.memory_space<vmem>>, vector<128x128xf32>
    %c0_11 = arith.constant 0 : index
    %c0_12 = arith.constant 0 : index
    %9 = vector.load %arg2[%c0_11, %c0_12] : memref<128x128xf32, #tpu.memory_space<vmem>>, vector<128x128xf32>
    %10 = arith.addf %8, %9 : vector<128x128xf32>
    %c0_13 = arith.constant 0 : index
    %c256_14 = arith.constant 256 : index
    %11 = vector.load %arg3[%c0_13, %c256_14] : memref<128x512xf32, #tpu.memory_space<vmem>>, vector<128x128xf32>
    tpu.vector_store %arg3[%c0_13, %c256_14], %10 {strides = array<i32>} : memref<128x512xf32, #tpu.memory_space<vmem>>, vector<128x128xf32>,
    %c0_15 = arith.constant 0 : index
    %c384 = arith.constant 384 : index
    %12 = vector.load %arg1[%c0_15, %c384] : memref<128x512xf32, #tpu.memory_space<vmem>>, vector<128x128xf32>
    %c0_16 = arith.constant 0 : index
    %c0_17 = arith.constant 0 : index
    %13 = vector.load %arg2[%c0_16, %c0_17] : memref<128x128xf32, #tpu.memory_space<vmem>>, vector<128x128xf32>
    %14 = arith.addf %12, %13 : vector<128x128xf32>
    %c0_18 = arith.constant 0 : index
    %c384_19 = arith.constant 384 : index
    %15 = vector.load %arg3[%c0_18, %c384_19] : memref<128x512xf32, #tpu.memory_space<vmem>>, vector<128x128xf32>
    tpu.vector_store %arg3[%c0_18, %c384_19], %14 {strides = array<i32>} : memref<128x512xf32, #tpu.memory_space<vmem>>, vector<128x128xf32>,
    return
  }
  func.func @transform_0(%arg0: i32) -> (i32, i32) {
    %c0_i32 = arith.constant 0 : i32
    %c0_i32_0 = arith.constant 0 : i32
    return %arg0, %c0_i32 : i32, i32
  }
  func.func @transform_1(%arg0: i32) -> (i32, i32) {
    %c0_i32 = arith.constant 0 : i32
    %c0_i32_0 = arith.constant 0 : i32
    return %arg0, %c0_i32 : i32, i32
  }
  func.func @transform_2(%arg0: i32) -> (i32, i32) {
    %c0_i32 = arith.constant 0 : i32
    %c0_i32_0 = arith.constant 0 : i32
    return %arg0, %c0_i32 : i32, i32
  }
}

</mosaic_0001>

<llo_original>
// kernel: tpu_custom_call.1
$region0: #{tpu_custom_call.1}
  #allocation0 [shape = 'u32[]', space=smem, size = 0x4, offset = 0x4, fixed_abs, tag = 'smem constant byte address 0x4 - core index']
  #allocation1 [shape = 'u32[72,128]{1,0:T(1,128)}', space=vmem, size = 0x9000, scoped, tag = 'internal scratch']
  %s0 = inlined_call_operand.hbm [shape: f32[256,512], index: 0, kind: input, shape index: {}]
  %s1 = inlined_call_operand.hbm [shape: f32[512,128], index: 1, kind: input, shape index: {}]
  %s2 = inlined_call_operand.hbm [shape: f32[256,512], index: 2, kind: output, shape index: {}]
  %s3 = sld [smem:[#allocation0]]
  $region49: #{tpu_custom_call.1} parent=0
    _
  %s5 = ssub.s32 1, %s3
  %s6 = scalar_select 0, %s5, %s3
  $region1: #{tpu_custom_call.1} parent=0
    #allocation2 [shape = 'u8[524288]{0}', space=vmem, size = 0x80000, scoped, tag = 'input window, operand 0']
    #allocation3 [shape = 's32[2]{0}', space=sflag, size = 0x8, scoped, tag = 'scoped memory for tpu_custom_call.1']
    #allocation4 [shape = 's32[2]{0}', space=sflag, size = 0x8, scoped, tag = 'scoped memory for tpu_custom_call.1']
    #allocation5 [shape = 'u8[131072]{0}', space=vmem, size = 0x20000, scoped, tag = 'input window, operand 1']
    #allocation6 [shape = 's32[2]{0}', space=sflag, size = 0x8, scoped, tag = 'scoped memory for tpu_custom_call.1']
    #allocation7 [shape = 'u8[524288]{0}', space=vmem, size = 0x80000, scoped, tag = 'output window, operand 0']
    %7 = vsyncpa [#allocation3], 0
    %s8 = scalar_lea.sflag [#allocation3], 1
    %9 = vsyncpa %s8, 0
    %10 = vsyncpa [#allocation6], 0
    %s11 = scalar_lea.sflag [#allocation6], 1
    %12 = vsyncpa %s11, 0
    %13 = vsyncpa [#allocation4], 0
    %s14 = scalar_lea.sflag [#allocation4], 1
    %15 = vsyncpa %s14, 0
    loop: start=0, step=1, limit=4
    $region2: #{tpu_custom_call.1} parent=1 // loop_pre_header
      _
    $region3: #{tpu_custom_call.1} parent=1 // loop_header
      %s17 = sphi 0, %s21
      %p18 = scmp.ge.s32.totalorder %s17, 4
      %s27 = sphi 0, %s29
      %s30 = sphi 0, %s27
      %s31 = sphi 0, %s30
      %s47 = sphi 0, %s31
      %s53 = sphi 0, %s55
      %s56 = sphi 0, %s53
      %s57 = sphi 0, %s56
      %s73 = sphi 0, %s57
      %s79 = sphi 0, %s81
      %s82 = sphi 0, %s79
      %s83 = sphi 0, %s82
      %s99 = sphi 0, %s83
    $region4: #{tpu_custom_call.1} parent=1 // loop_header_branch
      %20 = sbr.rel (%p18) target = $region8
    $region5: #{tpu_custom_call.1} parent=1 // loop_body
      %s22 = ssub.s32 %s17, 1
      %s23 = ssub.s32 %s17, 2
      %s24 = sadd.s32 %s17, 1
      %s25 = ssub.s32 %s17, %s24
      %p26 = scmp.eq.s32.totalorder %s25, 0
      %s28 = sadd.s32 %s27, 1
      %s29 = scalar_select %p26, %s27, %s28
      %p32 = pneg %p26
      %p33 = scmp.eq.s32.totalorder %s17, 1
      %p34 = por %p32, %p33
      %p35 = scmp.ne.s32.totalorder %s27, %s30
      %p36 = scmp.eq.s32.totalorder %s17, 0
      %p37 = por %p35, %p36
      %p38 = scmp.ne.s32.totalorder %s27, %s30
      %p39 = scmp.eq.s32.totalorder %s22, 1
      %p40 = por %p38, %p39
      %p41 = scmp.ne.s32.totalorder %s30, %s31
      %p42 = scmp.eq.s32.totalorder %s22, 0
      %p43 = por %p41, %p42
      %p44 = scmp.ne.s32.totalorder %s30, %s31
      %p45 = scmp.eq.s32.totalorder %s23, 1
      %p46 = por %p44, %p45
      %p48 = scmp.ne.s32.totalorder %s31, %s47
      %p49 = scmp.eq.s32.totalorder %s23, 0
      %p50 = por %p48, %p49
      %s51 = ssub.s32 %s17, %s24
      %p52 = scmp.eq.s32.totalorder %s51, 0
      %s54 = sadd.s32 %s53, 1
      %s55 = scalar_select %p52, %s53, %s54
      %p58 = pneg %p52
      %p59 = scmp.eq.s32.totalorder %s17, 1
      %p60 = por %p58, %p59
      %p61 = scmp.ne.s32.totalorder %s53, %s56
      %p62 = scmp.eq.s32.totalorder %s17, 0
      %p63 = por %p61, %p62
      %p64 = scmp.ne.s32.totalorder %s53, %s56
      %p65 = scmp.eq.s32.totalorder %s22, 1
      %p66 = por %p64, %p65
      %p67 = scmp.ne.s32.totalorder %s56, %s57
      %p68 = scmp.eq.s32.totalorder %s22, 0
      %p69 = por %p67, %p68
      %p70 = scmp.ne.s32.totalorder %s56, %s57
      %p71 = scmp.eq.s32.totalorder %s23, 1
      %p72 = por %p70, %p71
      %p74 = scmp.ne.s32.totalorder %s57, %s73
      %p75 = scmp.eq.s32.totalorder %s23, 0
      %p76 = por %p74, %p75
      %s77 = ssub.s32 %s17, %s24
      %p78 = scmp.eq.s32.totalorder %s77, 0
      %s80 = sadd.s32 %s79, 1
      %s81 = scalar_select %p78, %s79, %s80
      %p84 = pneg %p78
      %p85 = scmp.eq.s32.totalorder %s17, 1
      %p86 = por %p84, %p85
      %p87 = scmp.ne.s32.totalorder %s79, %s82
      %p88 = scmp.eq.s32.totalorder %s17, 0
      %p89 = por %p87, %p88
      %p90 = scmp.ne.s32.totalorder %s79, %s82
      %p91 = scmp.eq.s32.totalorder %s22, 1
      %p92 = por %p90, %p91
      %p93 = scmp.ne.s32.totalorder %s82, %s83
      %p94 = scmp.eq.s32.totalorder %s22, 0
      %p95 = por %p93, %p94
      %p96 = scmp.ne.s32.totalorder %s82, %s83
      %p97 = scmp.eq.s32.totalorder %s23, 1
      %p98 = por %p96, %p97
      %p100 = scmp.ne.s32.totalorder %s83, %s99
      %p101 = scmp.eq.s32.totalorder %s23, 0
      %p102 = por %p100, %p101
      %p103 = scmp.le.s32.totalorder 1, %s17
      %p104 = scmp.lt.s32.totalorder %s17, 3
      %p105 = pnand %p103, %p104
      %p106 = pneg %p105
      // Predicated region
      $region9: #{tpu_custom_call.1} parent=5 // pred_check
        _
      $region10: #{tpu_custom_call.1} parent=5 // pred_check_branch
        %108 = sbr.rel (%p105) target = $region12
      $region11: #{tpu_custom_call.1} parent=5 // pred_region
        %s109 = ssub.s32 %s17, 1
      $region12: #{tpu_custom_call.1} parent=5 // pred_fallthru
        _
      %p110 = scmp.lt.s32.totalorder %s17, 2
      // Predicated region
      $region13: #{tpu_custom_call.1} parent=5 // pred_check
        %p111 = pneg %p110
      $region14: #{tpu_custom_call.1} parent=5 // pred_check_branch
        %113 = sbr.rel (%p111) target = $region16
      $region15: #{tpu_custom_call.1} parent=5 // pred_region
        // Predicated region
        $region17: #{tpu_custom_call.1} parent=15 // pred_check
          %p114 = pneg %p37
        $region18: #{tpu_custom_call.1} parent=15 // pred_check_branch
          %116 = sbr.rel (%p114) target = $region20
        $region19: #{tpu_custom_call.1} parent=15 // pred_region
          %s117 = sand.u32 %s27, 1
          %s118 = scalar_lea.sflag [#allocation3], %s117
          %s119 = sand.u32 %s27, 1
          %s120 = smul.addr %s119, 512
          %s121 = scalar_lea.vmem [#allocation2], %s120
          %s122 = smul.u32 16, %s17
          %124 = vsyncadd %s118, 0
          %s125 = smul.addr %s122, 4
          %s126 = smul.addr %s125, 8
          %s127 = scalar_lea.hbm %s0, %s126
          %s128 = sshll.u32 %s127, 4
          %s129 = int_to_ptr.hbm [resolvable:$true] %s128
          %s130 = sshll.u32 %s121, 4
          %s131 = int_to_ptr.vmem [resolvable:$true] %s130
          %136 = dma.hbm_to_vmem [thread:$0]  %s129, 8192, %s131, %s118, 512, 512, 32
        $region20: #{tpu_custom_call.1} parent=15 // pred_fallthru
          _
        // Predicated region
        $region21: #{tpu_custom_call.1} parent=15 // pred_check
          %p137 = pneg %p63
        $region22: #{tpu_custom_call.1} parent=15 // pred_check_branch
          %139 = sbr.rel (%p137) target = $region24
        $region23: #{tpu_custom_call.1} parent=15 // pred_region
          %s140 = sand.u32 %s53, 1
          %s141 = scalar_lea.sflag [#allocation6], %s140
          %s142 = sand.u32 %s53, 1
          %s143 = smul.addr %s142, 128
          %s144 = scalar_lea.vmem [#allocation5], %s143
          %s145 = smul.u32 16, %s17
          %147 = vsyncadd %s141, 0
          %s148 = smul.addr %s145, 8
          %s149 = scalar_lea.hbm %s1, %s148
          %s150 = sshll.u32 %s149, 4
          %s151 = int_to_ptr.hbm [resolvable:$true] %s150
          %s152 = sshll.u32 %s144, 4
          %s153 = int_to_ptr.vmem [resolvable:$true] %s152
          %158 = dma.hbm_to_vmem [thread:$0]  %s151, 2048, %s153, %s141, 128, 128, 8
        $region24: #{tpu_custom_call.1} parent=15 // pred_fallthru
          _
      $region16: #{tpu_custom_call.1} parent=5 // pred_fallthru
        _
      %p159 = scmp.le.s32.totalorder 1, %s17
      %p160 = scmp.lt.s32.totalorder %s17, 3
      %p161 = pnand %p159, %p160
      %p162 = pneg %p161
      // Predicated region
      $region25: #{tpu_custom_call.1} parent=5 // pred_check
        _
      $region26: #{tpu_custom_call.1} parent=5 // pred_check_branch
        %164 = sbr.rel (%p161) target = $region28
      $region27: #{tpu_custom_call.1} parent=5 // pred_region
        %s165 = ssub.s32 %s17, 1
        %s166 = sand.u32 %s30, 1
        %s167 = scalar_lea.sflag [#allocation3], %s166
        %s168 = sand.u32 %s30, 1
        %s169 = smul.addr %s168, 512
        %s170 = scalar_lea.vmem [#allocation2], %s169
        // Predicated region
        $region29: #{tpu_custom_call.1} parent=27 // pred_check
          %p171 = pneg %p43
        $region30: #{tpu_custom_call.1} parent=27 // pred_check_branch
          %173 = sbr.rel (%p171) target = $region32
        $region31: #{tpu_custom_call.1} parent=27 // pred_region
          %175 = dma.done %s167, 8192
        $region32: #{tpu_custom_call.1} parent=27 // pred_fallthru
          _
        %s176 = sand.u32 %s56, 1
        %s177 = scalar_lea.sflag [#allocation6], %s176
        %s178 = sand.u32 %s56, 1
        %s179 = smul.addr %s178, 128
        %s180 = scalar_lea.vmem [#allocation5], %s179
        // Predicated region
        $region33: #{tpu_custom_call.1} parent=27 // pred_check
          %p181 = pneg %p69
        $region34: #{tpu_custom_call.1} parent=27 // pred_check_branch
          %183 = sbr.rel (%p181) target = $region36
        $region35: #{tpu_custom_call.1} parent=27 // pred_region
          %185 = dma.done %s177, 2048
        $region36: #{tpu_custom_call.1} parent=27 // pred_fallthru
          _
        %s186 = sand.u32 %s30, 1
        %s187 = scalar_lea.sflag [#allocation3], %s186
        %s188 = sand.u32 %s30, 1
        %s189 = smul.addr %s188, 512
        %s190 = scalar_lea.vmem [#allocation2], %s189
        %p191 = pneg %p43
        %p192 = pneg %p40
        %s193 = sand.u32 %s56, 1
        %s194 = scalar_lea.sflag [#allocation6], %s193
        %s195 = sand.u32 %s56, 1
        %s196 = smul.addr %s195, 128
        %s197 = scalar_lea.vmem [#allocation5], %s196
        %p198 = pneg %p69
        %p199 = pneg %p66
        %p200 = pneg %p95
        %p201 = pneg %p92
        %s202 = sand.u32 %s82, 1
        %s203 = scalar_lea.sflag [#allocation4], %s202
        %s204 = sand.u32 %s82, 1
        %s205 = smul.addr %s204, 512
        %s206 = scalar_lea.vmem [#allocation7], %s205
        %s207 = smul.u32 16, %s22
        %s208 = smul.u32 16, %s22
        %s209 = smul.u32 16, %s22
        %v210 = vld [vmem:[%s170] sm:$0xff]
        %v211 = vld [vmem:[%s170 + $0x20] sm:$0xff]
        %v212 = vld [vmem:[%s170 + $0x40] sm:$0xff]
        %v213 = vld [vmem:[%s170 + $0x60] sm:$0xff]
        %v214 = vld [vmem:[%s170 + $0x80] sm:$0xff]
        %v215 = vld [vmem:[%s170 + $0xa0] sm:$0xff]
        %v216 = vld [vmem:[%s170 + $0xc0] sm:$0xff]
        %v217 = vld [vmem:[%s170 + $0xe0] sm:$0xff]
        %v218 = vld [vmem:[%s170 + $0x100] sm:$0xff]
        %v219 = vld [vmem:[%s170 + $0x120] sm:$0xff]
        %v220 = vld [vmem:[%s170 + $0x140] sm:$0xff]
        %v221 = vld [vmem:[%s170 + $0x160] sm:$0xff]
        %v222 = vld [vmem:[%s170 + $0x180] sm:$0xff]
        %v223 = vld [vmem:[%s170 + $0x1a0] sm:$0xff]
        %v224 = vld [vmem:[%s170 + $0x1c0] sm:$0xff]
        %v225 = vld [vmem:[%s170 + $0x1e0] sm:$0xff]
        %v226 = vld [vmem:[%s180] sm:$0xff]
        %v227 = vld [vmem:[%s180 + $0x8] sm:$0xff]
        %v228 = vld [vmem:[%s180 + $0x10] sm:$0xff]
        %v229 = vld [vmem:[%s180 + $0x18] sm:$0xff]
        %v230 = vld [vmem:[%s180 + $0x20] sm:$0xff]
        %v231 = vld [vmem:[%s180 + $0x28] sm:$0xff]
        %v232 = vld [vmem:[%s180 + $0x30] sm:$0xff]
        %v233 = vld [vmem:[%s180 + $0x38] sm:$0xff]
        %v234 = vld [vmem:[%s180 + $0x40] sm:$0xff]
        %v235 = vld [vmem:[%s180 + $0x48] sm:$0xff]
        %v236 = vld [vmem:[%s180 + $0x50] sm:$0xff]
        %v237 = vld [vmem:[%s180 + $0x58] sm:$0xff]
        %v238 = vld [vmem:[%s180 + $0x60] sm:$0xff]
        %v239 = vld [vmem:[%s180 + $0x68] sm:$0xff]
        %v240 = vld [vmem:[%s180 + $0x70] sm:$0xff]
        %v241 = vld [vmem:[%s180 + $0x78] sm:$0xff]
        %v242 = vadd.f32 %v210, %v226
        %v243 = vadd.f32 %v211, %v227
        %v244 = vadd.f32 %v212, %v228
        %v245 = vadd.f32 %v213, %v229
        %v246 = vadd.f32 %v214, %v230
        %v247 = vadd.f32 %v215, %v231
        %v248 = vadd.f32 %v216, %v232
        %v249 = vadd.f32 %v217, %v233
        %v250 = vadd.f32 %v218, %v234
        %v251 = vadd.f32 %v219, %v235
        %v252 = vadd.f32 %v220, %v236
        %v253 = vadd.f32 %v221, %v237
        %v254 = vadd.f32 %v222, %v238
        %v255 = vadd.f32 %v223, %v239
        %v256 = vadd.f32 %v224, %v240
        %v257 = vadd.f32 %v225, %v241
        %258 = vst [vmem:[%s206] sm:$0xff] %v242
        %259 = vst [vmem:[%s206 + $0x20] sm:$0xff] %v243
        %260 = vst [vmem:[%s206 + $0x40] sm:$0xff] %v244
        %261 = vst [vmem:[%s206 + $0x60] sm:$0xff] %v245
        %262 = vst [vmem:[%s206 + $0x80] sm:$0xff] %v246
        %263 = vst [vmem:[%s206 + $0xa0] sm:$0xff] %v247
        %264 = vst [vmem:[%s206 + $0xc0] sm:$0xff] %v248
        %265 = vst [vmem:[%s206 + $0xe0] sm:$0xff] %v249
        %266 = vst [vmem:[%s206 + $0x100] sm:$0xff] %v250
        %267 = vst [vmem:[%s206 + $0x120] sm:$0xff] %v251
        %268 = vst [vmem:[%s206 + $0x140] sm:$0xff] %v252
        %269 = vst [vmem:[%s206 + $0x160] sm:$0xff] %v253
        %270 = vst [vmem:[%s206 + $0x180] sm:$0xff] %v254
        %271 = vst [vmem:[%s206 + $0x1a0] sm:$0xff] %v255
        %272 = vst [vmem:[%s206 + $0x1c0] sm:$0xff] %v256
        %273 = vst [vmem:[%s206 + $0x1e0] sm:$0xff] %v257
        %v274 = vld [vmem:[%s170 + $0x8] sm:$0xff]
        %v275 = vld [vmem:[%s170 + $0x28] sm:$0xff]
        %v276 = vld [vmem:[%s170 + $0x48] sm:$0xff]
        %v277 = vld [vmem:[%s170 + $0x68] sm:$0xff]
        %v278 = vld [vmem:[%s170 + $0x88] sm:$0xff]
        %v279 = vld [vmem:[%s170 + $0xa8] sm:$0xff]
        %v280 = vld [vmem:[%s170 + $0xc8] sm:$0xff]
        %v281 = vld [vmem:[%s170 + $0xe8] sm:$0xff]
        %v282 = vld [vmem:[%s170 + $0x108] sm:$0xff]
        %v283 = vld [vmem:[%s170 + $0x128] sm:$0xff]
        %v284 = vld [vmem:[%s170 + $0x148] sm:$0xff]
        %v285 = vld [vmem:[%s170 + $0x168] sm:$0xff]
        %v286 = vld [vmem:[%s170 + $0x188] sm:$0xff]
        %v287 = vld [vmem:[%s170 + $0x1a8] sm:$0xff]
        %v288 = vld [vmem:[%s170 + $0x1c8] sm:$0xff]
        %v289 = vld [vmem:[%s170 + $0x1e8] sm:$0xff]
        %v290 = vld [vmem:[%s180] sm:$0xff]
        %v291 = vld [vmem:[%s180 + $0x8] sm:$0xff]
        %v292 = vld [vmem:[%s180 + $0x10] sm:$0xff]
        %v293 = vld [vmem:[%s180 + $0x18] sm:$0xff]
        %v294 = vld [vmem:[%s180 + $0x20] sm:$0xff]
        %v295 = vld [vmem:[%s180 + $0x28] sm:$0xff]
        %v296 = vld [vmem:[%s180 + $0x30] sm:$0xff]
        %v297 = vld [vmem:[%s180 + $0x38] sm:$0xff]
        %v298 = vld [vmem:[%s180 + $0x40] sm:$0xff]
        %v299 = vld [vmem:[%s180 + $0x48] sm:$0xff]
        %v300 = vld [vmem:[%s180 + $0x50] sm:$0xff]
        %v301 = vld [vmem:[%s180 + $0x58] sm:$0xff]
        %v302 = vld [vmem:[%s180 + $0x60] sm:$0xff]
        %v303 = vld [vmem:[%s180 + $0x68] sm:$0xff]
        %v304 = vld [vmem:[%s180 + $0x70] sm:$0xff]
        %v305 = vld [vmem:[%s180 + $0x78] sm:$0xff]
        %v306 = vadd.f32 %v274, %v290
        %v307 = vadd.f32 %v275, %v291
        %v308 = vadd.f32 %v276, %v292
        %v309 = vadd.f32 %v277, %v293
        %v310 = vadd.f32 %v278, %v294
        %v311 = vadd.f32 %v279, %v295
        %v312 = vadd.f32 %v280, %v296
        %v313 = vadd.f32 %v281, %v297
        %v314 = vadd.f32 %v282, %v298
        %v315 = vadd.f32 %v283, %v299
        %v316 = vadd.f32 %v284, %v300
        %v317 = vadd.f32 %v285, %v301
        %v318 = vadd.f32 %v286, %v302
        %v319 = vadd.f32 %v287, %v303
        %v320 = vadd.f32 %v288, %v304
        %v321 = vadd.f32 %v289, %v305
        %322 = vst [vmem:[%s206 + $0x8] sm:$0xff] %v306
        %323 = vst [vmem:[%s206 + $0x28] sm:$0xff] %v307
        %324 = vst [vmem:[%s206 + $0x48] sm:$0xff] %v308
        %325 = vst [vmem:[%s206 + $0x68] sm:$0xff] %v309
        %326 = vst [vmem:[%s206 + $0x88] sm:$0xff] %v310
        %327 = vst [vmem:[%s206 + $0xa8] sm:$0xff] %v311
        %328 = vst [vmem:[%s206 + $0xc8] sm:$0xff] %v312
        %329 = vst [vmem:[%s206 + $0xe8] sm:$0xff] %v313
        %330 = vst [vmem:[%s206 + $0x108] sm:$0xff] %v314
        %331 = vst [vmem:[%s206 + $0x128] sm:$0xff] %v315
        %332 = vst [vmem:[%s206 + $0x148] sm:$0xff] %v316
        %333 = vst [vmem:[%s206 + $0x168] sm:$0xff] %v317
        %334 = vst [vmem:[%s206 + $0x188] sm:$0xff] %v318
        %335 = vst [vmem:[%s206 + $0x1a8] sm:$0xff] %v319
        %336 = vst [vmem:[%s206 + $0x1c8] sm:$0xff] %v320
        %337 = vst [vmem:[%s206 + $0x1e8] sm:$0xff] %v321
        %v338 = vld [vmem:[%s170 + $0x10] sm:$0xff]
        %v339 = vld [vmem:[%s170 + $0x30] sm:$0xff]
        %v340 = vld [vmem:[%s170 + $0x50] sm:$0xff]
        %v341 = vld [vmem:[%s170 + $0x70] sm:$0xff]
        %v342 = vld [vmem:[%s170 + $0x90] sm:$0xff]
        %v343 = vld [vmem:[%s170 + $0xb0] sm:$0xff]
        %v344 = vld [vmem:[%s170 + $0xd0] sm:$0xff]
        %v345 = vld [vmem:[%s170 + $0xf0] sm:$0xff]
        %v346 = vld [vmem:[%s170 + $0x110] sm:$0xff]
        %v347 = vld [vmem:[%s170 + $0x130] sm:$0xff]
        %v348 = vld [vmem:[%s170 + $0x150] sm:$0xff]
        %v349 = vld [vmem:[%s170 + $0x170] sm:$0xff]
        %v350 = vld [vmem:[%s170 + $0x190] sm:$0xff]
        %v351 = vld [vmem:[%s170 + $0x1b0] sm:$0xff]
        %v352 = vld [vmem:[%s170 + $0x1d0] sm:$0xff]
        %v353 = vld [vmem:[%s170 + $0x1f0] sm:$0xff]
        %v354 = vld [vmem:[%s180] sm:$0xff]
        %v355 = vld [vmem:[%s180 + $0x8] sm:$0xff]
        %v356 = vld [vmem:[%s180 + $0x10] sm:$0xff]
        %v357 = vld [vmem:[%s180 + $0x18] sm:$0xff]
        %v358 = vld [vmem:[%s180 + $0x20] sm:$0xff]
        %v359 = vld [vmem:[%s180 + $0x28] sm:$0xff]
        %v360 = vld [vmem:[%s180 + $0x30] sm:$0xff]
        %v361 = vld [vmem:[%s180 + $0x38] sm:$0xff]
        %v362 = vld [vmem:[%s180 + $0x40] sm:$0xff]
        %v363 = vld [vmem:[%s180 + $0x48] sm:$0xff]
        %v364 = vld [vmem:[%s180 + $0x50] sm:$0xff]
        %v365 = vld [vmem:[%s180 + $0x58] sm:$0xff]
        %v366 = vld [vmem:[%s180 + $0x60] sm:$0xff]
        %v367 = vld [vmem:[%s180 + $0x68] sm:$0xff]
        %v368 = vld [vmem:[%s180 + $0x70] sm:$0xff]
        %v369 = vld [vmem:[%s180 + $0x78] sm:$0xff]
        %v370 = vadd.f32 %v338, %v354
        %v371 = vadd.f32 %v339, %v355
        %v372 = vadd.f32 %v340, %v356
        %v373 = vadd.f32 %v341, %v357
        %v374 = vadd.f32 %v342, %v358
        %v375 = vadd.f32 %v343, %v359
        %v376 = vadd.f32 %v344, %v360
        %v377 = vadd.f32 %v345, %v361
        %v378 = vadd.f32 %v346, %v362
        %v379 = vadd.f32 %v347, %v363
        %v380 = vadd.f32 %v348, %v364
        %v381 = vadd.f32 %v349, %v365
        %v382 = vadd.f32 %v350, %v366
        %v383 = vadd.f32 %v351, %v367
        %v384 = vadd.f32 %v352, %v368
        %v385 = vadd.f32 %v353, %v369
        %386 = vst [vmem:[%s206 + $0x10] sm:$0xff] %v370
        %387 = vst [vmem:[%s206 + $0x30] sm:$0xff] %v371
        %388 = vst [vmem:[%s206 + $0x50] sm:$0xff] %v372
        %389 = vst [vmem:[%s206 + $0x70] sm:$0xff] %v373
        %390 = vst [vmem:[%s206 + $0x90] sm:$0xff] %v374
        %391 = vst [vmem:[%s206 + $0xb0] sm:$0xff] %v375
        %392 = vst [vmem:[%s206 + $0xd0] sm:$0xff] %v376
        %393 = vst [vmem:[%s206 + $0xf0] sm:$0xff] %v377
        %394 = vst [vmem:[%s206 + $0x110] sm:$0xff] %v378
        %395 = vst [vmem:[%s206 + $0x130] sm:$0xff] %v379
        %396 = vst [vmem:[%s206 + $0x150] sm:$0xff] %v380
        %397 = vst [vmem:[%s206 + $0x170] sm:$0xff] %v381
        %398 = vst [vmem:[%s206 + $0x190] sm:$0xff] %v382
        %399 = vst [vmem:[%s206 + $0x1b0] sm:$0xff] %v383
        %400 = vst [vmem:[%s206 + $0x1d0] sm:$0xff] %v384
        %401 = vst [vmem:[%s206 + $0x1f0] sm:$0xff] %v385
        %v402 = vld [vmem:[%s170 + $0x18] sm:$0xff]
        %v403 = vld [vmem:[%s170 + $0x38] sm:$0xff]
        %v404 = vld [vmem:[%s170 + $0x58] sm:$0xff]
        %v405 = vld [vmem:[%s170 + $0x78] sm:$0xff]
        %v406 = vld [vmem:[%s170 + $0x98] sm:$0xff]
        %v407 = vld [vmem:[%s170 + $0xb8] sm:$0xff]
        %v408 = vld [vmem:[%s170 + $0xd8] sm:$0xff]
        %v409 = vld [vmem:[%s170 + $0xf8] sm:$0xff]
        %v410 = vld [vmem:[%s170 + $0x118] sm:$0xff]
        %v411 = vld [vmem:[%s170 + $0x138] sm:$0xff]
        %v412 = vld [vmem:[%s170 + $0x158] sm:$0xff]
        %v413 = vld [vmem:[%s170 + $0x178] sm:$0xff]
        %v414 = vld [vmem:[%s170 + $0x198] sm:$0xff]
        %v415 = vld [vmem:[%s170 + $0x1b8] sm:$0xff]
        %v416 = vld [vmem:[%s170 + $0x1d8] sm:$0xff]
        %v417 = vld [vmem:[%s170 + $0x1f8] sm:$0xff]
        %v418 = vld [vmem:[%s180] sm:$0xff]
        %v419 = vld [vmem:[%s180 + $0x8] sm:$0xff]
        %v420 = vld [vmem:[%s180 + $0x10] sm:$0xff]
        %v421 = vld [vmem:[%s180 + $0x18] sm:$0xff]
        %v422 = vld [vmem:[%s180 + $0x20] sm:$0xff]
        %v423 = vld [vmem:[%s180 + $0x28] sm:$0xff]
        %v424 = vld [vmem:[%s180 + $0x30] sm:$0xff]
        %v425 = vld [vmem:[%s180 + $0x38] sm:$0xff]
        %v426 = vld [vmem:[%s180 + $0x40] sm:$0xff]
        %v427 = vld [vmem:[%s180 + $0x48] sm:$0xff]
        %v428 = vld [vmem:[%s180 + $0x50] sm:$0xff]
        %v429 = vld [vmem:[%s180 + $0x58] sm:$0xff]
        %v430 = vld [vmem:[%s180 + $0x60] sm:$0xff]
        %v431 = vld [vmem:[%s180 + $0x68] sm:$0xff]
        %v432 = vld [vmem:[%s180 + $0x70] sm:$0xff]
        %v433 = vld [vmem:[%s180 + $0x78] sm:$0xff]
        %v434 = vadd.f32 %v402, %v418
        %v435 = vadd.f32 %v403, %v419
        %v436 = vadd.f32 %v404, %v420
        %v437 = vadd.f32 %v405, %v421
        %v438 = vadd.f32 %v406, %v422
        %v439 = vadd.f32 %v407, %v423
        %v440 = vadd.f32 %v408, %v424
        %v441 = vadd.f32 %v409, %v425
        %v442 = vadd.f32 %v410, %v426
        %v443 = vadd.f32 %v411, %v427
        %v444 = vadd.f32 %v412, %v428
        %v445 = vadd.f32 %v413, %v429
        %v446 = vadd.f32 %v414, %v430
        %v447 = vadd.f32 %v415, %v431
        %v448 = vadd.f32 %v416, %v432
        %v449 = vadd.f32 %v417, %v433
        %450 = vst [vmem:[%s206 + $0x18] sm:$0xff] %v434
        %451 = vst [vmem:[%s206 + $0x38] sm:$0xff] %v435
        %452 = vst [vmem:[%s206 + $0x58] sm:$0xff] %v436
        %453 = vst [vmem:[%s206 + $0x78] sm:$0xff] %v437
        %454 = vst [vmem:[%s206 + $0x98] sm:$0xff] %v438
        %455 = vst [vmem:[%s206 + $0xb8] sm:$0xff] %v439
        %456 = vst [vmem:[%s206 + $0xd8] sm:$0xff] %v440
        %457 = vst [vmem:[%s206 + $0xf8] sm:$0xff] %v441
        %458 = vst [vmem:[%s206 + $0x118] sm:$0xff] %v442
        %459 = vst [vmem:[%s206 + $0x138] sm:$0xff] %v443
        %460 = vst [vmem:[%s206 + $0x158] sm:$0xff] %v444
        %461 = vst [vmem:[%s206 + $0x178] sm:$0xff] %v445
        %462 = vst [vmem:[%s206 + $0x198] sm:$0xff] %v446
        %463 = vst [vmem:[%s206 + $0x1b8] sm:$0xff] %v447
        %464 = vst [vmem:[%s206 + $0x1d8] sm:$0xff] %v448
        %465 = vst [vmem:[%s206 + $0x1f8] sm:$0xff] %v449
        %s466 = sand.u32 %s82, 1
        %s467 = scalar_lea.sflag [#allocation4], %s466
        %s468 = sand.u32 %s82, 1
        %s469 = smul.addr %s468, 512
        %s470 = scalar_lea.vmem [#allocation7], %s469
        // Predicated region
        $region37: #{tpu_custom_call.1} parent=27 // pred_check
          %p471 = pneg %p92
        $region38: #{tpu_custom_call.1} parent=27 // pred_check_branch
          %473 = sbr.rel (%p471) target = $region40
        $region39: #{tpu_custom_call.1} parent=27 // pred_region
          %s474 = smul.u32 16, %s22
          %476 = vsyncadd %s467, 0
          %s477 = smul.addr %s474, 4
          %s478 = smul.addr %s477, 8
          %s479 = scalar_lea.hbm %s2, %s478
          %s480 = sshll.u32 %s470, 4
          %s481 = int_to_ptr.vmem [resolvable:$true] %s480
          %s482 = sshll.u32 %s479, 4
          %s483 = int_to_ptr.hbm [resolvable:$true] %s482
          %488 = dma.vmem_to_hbm [thread:$0]  %s481, 8192, %s483, %s467, 512, 512, 32
        $region40: #{tpu_custom_call.1} parent=27 // pred_fallthru
          _
      $region28: #{tpu_custom_call.1} parent=5 // pred_fallthru
        _
      %p489 = scmp.le.s32.totalorder 2, %s17
      // Predicated region
      $region41: #{tpu_custom_call.1} parent=5 // pred_check
        %p490 = pneg %p489
      $region42: #{tpu_custom_call.1} parent=5 // pred_check_branch
        %492 = sbr.rel (%p490) target = $region44
      $region43: #{tpu_custom_call.1} parent=5 // pred_region
        %s493 = ssub.s32 %s17, 2
        // Predicated region
        $region45: #{tpu_custom_call.1} parent=43 // pred_check
          %p494 = pneg %p98
        $region46: #{tpu_custom_call.1} parent=43 // pred_check_branch
          %496 = sbr.rel (%p494) target = $region48
        $region47: #{tpu_custom_call.1} parent=43 // pred_region
          %s497 = sand.u32 %s83, 1
          %s498 = scalar_lea.sflag [#allocation4], %s497
          %s499 = sand.u32 %s83, 1
          %s500 = smul.addr %s499, 512
          %s501 = scalar_lea.vmem [#allocation7], %s500
          %503 = dma.done %s498, 8192
        $region48: #{tpu_custom_call.1} parent=43 // pred_fallthru
          _
      $region44: #{tpu_custom_call.1} parent=5 // pred_fallthru
        _
    $region6: #{tpu_custom_call.1} parent=1 // loop_footer
      %s21 = sadd.s32 1, %s17
    $region7: #{tpu_custom_call.1} parent=1 // loop_footer_branch
      %16 = sbr.rel target = $region3
    $region8: #{tpu_custom_call.1} parent=1 // loop_exit
      _
    %504 = vsyncpa [#allocation3], 1
    %s505 = scalar_lea.sflag [#allocation3], 1
    %506 = vsyncpa %s505, 1
    %507 = vsyncpa [#allocation6], 1
    %s508 = scalar_lea.sflag [#allocation6], 1
    %509 = vsyncpa %s508, 1
    %510 = vsyncpa [#allocation4], 1
    %s511 = scalar_lea.sflag [#allocation4], 1
    %512 = vsyncpa %s511, 1

</llo_original>
